<compile_context>
chip_gen: v7x
topology: tpu7x:2x2x1
jax: 0.10.0
libtpu: 0.0.40
codegen_flags: <defaults>
</compile_context>

<pallas_src>
import math
import functools

import numpy as np
import jax
import jax.numpy as jnp
from jax.experimental import pallas as pl
from jax.experimental.pallas import tpu as pltpu


# ----------------------------------------------------------------------------
# Parameter / constant construction (mirrors the PyTorch __init__)
# ----------------------------------------------------------------------------
def make_tqs_pe_params(key, d_model, param_dim, max_system_size=(50, 50)):
    """Returns (param_embedding [param_dim, 1, d_model], pe [X, Y, 1, d_model])."""
    x, y = int(max_system_size[0]), int(max_system_size[1])
    param_embedding = 0.02 * jax.random.normal(
        key, (param_dim, 1, d_model), dtype=jnp.float32
    )

    channels = int(np.ceil(d_model / 4) * 2)
    div_term = jnp.exp(
        jnp.arange(0, channels, 2, dtype=jnp.float32)
        * (-math.log(10000.0) / channels)
    )
    pos_x = jnp.arange(x, dtype=jnp.float32)[:, None]
    pos_y = jnp.arange(y, dtype=jnp.float32)[:, None]
    sin_inp_x = pos_x * div_term
    sin_inp_y = pos_y * div_term

    emb_x = jnp.zeros((x, channels), dtype=jnp.float32)
    emb_x = emb_x.at[:, 0::2].set(jnp.sin(sin_inp_x))
    emb_x = emb_x.at[:, 1::2].set(jnp.cos(sin_inp_x))
    emb_y = jnp.zeros((y, channels), dtype=jnp.float32)
    emb_y = emb_y.at[:, 0::2].set(jnp.sin(sin_inp_y))
    emb_y = emb_y.at[:, 1::2].set(jnp.cos(sin_inp_y))

    pe = jnp.zeros((x, y, 2 * channels), dtype=jnp.float32)
    pe = pe.at[:, :, :channels].set(emb_x[:, None, :])
    pe = pe.at[:, :, channels:].set(emb_y[None, :, :])
    pe = pe[:, :, :d_model]               # [x, y, d_model]
    pe = pe[:, :, None, :]                # [x, y, 1, d_model]
    return param_embedding, pe


# ----------------------------------------------------------------------------
# Hoisted glue: build the [S, D] positional-encoding table ONCE per
# (seq_len, system_size, dtype).  Constant given module params -> do not
# rebuild inside the per-call hot path.
# ----------------------------------------------------------------------------
def build_pe_sequence(param_embedding, pe, seq_len, system_size=None,
                      dtype=jnp.float32):
    P, _, D = param_embedding.shape
    if system_size is None:
        system_size = (pe.shape[0], pe.shape[1])
    pe_phys = pe[: system_size[0], : system_size[1]].reshape(-1, D)      # [X*Y, D]
    pe_full = jnp.concatenate([param_embedding[:, 0, :], pe_phys], 0)    # [P+X*Y, D]
    if seq_len > pe_full.shape[0]:
        raise ValueError(
            f"sequence length {seq_len} exceeds param_dim + X*Y = {pe_full.shape[0]}"
        )
    return pe_full[:seq_len].astype(dtype)                                # [S, D]


# ----------------------------------------------------------------------------
# Pallas kernel: lane-dense broadcasted add.
#   x_ref : [block_s, lane_w]      (flattened batch x embed, lane-dense)
#   pe_ref: [block_s, W]           (pe pre-tiled to 128-aligned width W)
#   o_ref : [block_s, lane_w]      with lane_w = n_chunks * W
# Replication of pe over the batch is done with whole-vreg, statically
# 128-aligned slice adds -> no XLU lane shuffles, no tile-sized temp.
# ----------------------------------------------------------------------------
def _add_pe_kernel(x_ref, pe_ref, o_ref, *, n_chunks, chunk_w):
    pe_blk = pe_ref[...]                                     # [block_s, W]
    if n_chunks == 1:
        o_ref[...] = x_ref[...] + pe_blk
    else:
        for c in range(n_chunks):                            # static unroll
            sl = pl.ds(c * chunk_w, chunk_w)                 # 128-aligned offset
            o_ref[:, sl] = x_ref[:, sl] + pe_blk


# ----------------------------------------------------------------------------
# Tiling heuristics
# ----------------------------------------------------------------------------
def _rep_width(B, D, max_chunks=16):
    """Smallest W = k*D with W % 128 == 0, k | B, and (B*D)//W <= max_chunks.
    Caller guarantees (B*D) % 128 == 0, so W = B*D is always a valid fallback."""
    g = math.gcd(D, 128)
    k0 = 128 // g                               # smallest k with (k*D) % 128 == 0
    cands = sorted({k for k in range(k0, B + 1, k0) if B % k == 0} | {B})
    for k in cands:
        w = k * D
        if w % 128 == 0 and (B * D) % w == 0 and (B * D) // w <= max_chunks:
            return w
    return B * D


def _pick_blocks(S, BD, W, itemsize, budget_bytes, block_s=None, lane_block=None):
    """Block rows/lanes so the double-buffered working set fits budget_bytes."""
    packing = max(1, 4 // max(1, itemsize))     # f32:1, bf16:2, int8/fp8:4
    sub = 8 * packing                           # sublane-packing alignment

    def rows_for(lane_w):
        per_row = (2 * lane_w + W) * itemsize   # x + out + pe per s-row
        return budget_bytes // (2 * per_row)    # 2x for double buffering

    if lane_block is None:
        lane_w = BD
        if rows_for(lane_w) < sub:
            # Wide-row guard: shrink lane block (multiple of W, dividing B*D).
            C = BD // W
            best = 1
            for cpt in range(1, C + 1):
                if C % cpt == 0 and rows_for(W * cpt) >= sub:
                    best = cpt
            lane_w = W * best
    else:
        if lane_block % W != 0:
            raise ValueError(f"lane_block={lane_block} must be a multiple of W={W}")
        lane_w = lane_block

    if block_s is None:
        bs = rows_for(lane_w)
        if bs >= S:
            block_s = S
        else:
            block_s = min(S, max(sub, (bs // sub) * sub))
    return int(block_s), int(lane_w)


def _vmem_config():
    """(vmem_limit_bytes, working-set budget) per TPU generation."""
    kind = ""
    try:
        kind = (getattr(jax.devices()[0], "device_kind", "") or "").lower()
    except Exception:
        pass
    if "v7" in kind:
        # 64 MiB physical VMEM per TC: leave headroom under the limit.
        return 48 << 20, 28 << 20
    # v5e / v6e: 128 MiB physical; the default scoped limit (16/32 MiB) is too
    # small for ~6-8 MiB double-buffered tiles, so raise it explicitly.
    return 64 << 20, 28 << 20


# ----------------------------------------------------------------------------
# Wrapper
# ----------------------------------------------------------------------------
def add_positional_encoding(x, pe_seq, *, block_s=None, lane_block=None,
                            max_chunks=16, min_pallas_bytes=1 << 20,
                            force_pallas=False, donate_x=False):
    """x: [S, B, D], pe_seq: [S, D] -> [S, B, D]  (x + pe broadcast over batch)."""
    S, B, D = x.shape
    if pe_seq.dtype != x.dtype:
        pe_seq = pe_seq.astype(x.dtype)      # prefer building pe_seq in x.dtype
    itemsize = jnp.dtype(x.dtype).itemsize
    BD = B * D
    total_bytes = S * BD * itemsize

    # XLA fast path: tiny tensors (launch + ~0.35us/step overhead dominates) or
    # a last dim that cannot be made lane-dense (B*D % 128 != 0 -> masked
    # vst.msk stores).  Fused broadcast-add hits the same HBM roofline.
    if BD % 128 != 0 or (total_bytes < min_pallas_bytes and not force_pallas):
        return x + pe_seq[:, None, :]

    vmem_limit, budget = _vmem_config()

    # Pre-tile pe ONCE to a 128-lane-aligned width W (tiny vs x) so the
    # in-kernel batch broadcast is whole-vreg copies, not lane shuffles.
    W = _rep_width(B, D, max_chunks=max_chunks)
    rep = W // D
    pe_wide = pe_seq if rep == 1 else jnp.tile(pe_seq, (1, rep))   # [S, W]

    block_s, lane_w = _pick_blocks(S, BD, W, itemsize, budget,
                                   block_s=block_s, lane_block=lane_block)
    n_chunks = lane_w // W

    x_flat = x.reshape(S, BD)                    # free contiguous, lane-dense view
    grid = (pl.cdiv(S, block_s), pl.cdiv(BD, lane_w))

    kernel = functools.partial(_add_pe_kernel, n_chunks=n_chunks, chunk_w=W)
    out_flat = pl.pallas_call(
        kernel,
        out_shape=jax.ShapeDtypeStruct((S, BD), x.dtype),
        grid_spec=pltpu.PrefetchScalarGridSpec(
            num_scalar_prefetch=0,
            grid=grid,
            in_specs=[
                pl.BlockSpec((block_s, lane_w), lambda i, j: (i, j)),
                pl.BlockSpec((block_s, W), lambda i, j: (i, 0)),
            ],
            out_specs=pl.BlockSpec((block_s, lane_w), lambda i, j: (i, j)),
        ),
        compiler_params=pltpu.CompilerParams(
            dimension_semantics=("parallel", "parallel"),   # megacore on v7x
            vmem_limit_bytes=vmem_limit,
        ),
        input_output_aliases=({0: 0} if donate_x else {}),
    )(x_flat, pe_wide)

    return out_flat.reshape(S, B, D)


def tqs_pos_encoding_2d_forward(x, param_embedding=None, pe=None,
                                system_size=None, pe_seq=None, **kw):
    """Full forward (module semantics).  Pass pe_seq to skip PE table rebuild."""
    S, B, D = x.shape
    if pe_seq is None:
        pe_seq = build_pe_sequence(param_embedding, pe, S, system_size,
                                   dtype=x.dtype)
    out = add_positional_encoding(x, pe_seq, **kw)
    # dropout p=0 => identity
    # TODO(synk): stochastic dropout (p>0) not implemented; module default is p=0.
    return out


# ----------------------------------------------------------------------------
# Pure-JAX reference for correctness check
# ----------------------------------------------------------------------------
def _reference(x, param_embedding, pe, system_size=None):
    S, B, D = x.shape
    if system_size is None:
        system_size = (pe.shape[0], pe.shape[1])
    pe_phys = pe[: system_size[0], : system_size[1]].reshape(-1, 1, D)
    pe_full = jnp.concatenate([param_embedding, pe_phys], axis=0)
    return x + pe_full[:S]


if __name__ == "__main__":
    d_model = 32
    param_dim = 2

    key = jax.random.PRNGKey(0)
    k_param, k1, k2, k3, k4 = jax.random.split(key, 5)

    # --- case 1: B*D = 128 (single block, rep width == full row) -------------
    param_embedding, pe = make_tqs_pe_params(k_param, d_model, param_dim, (8, 8))
    x1 = jax.random.normal(k1, (8, 4, d_model), dtype=jnp.float32)
    pe_seq1 = build_pe_sequence(param_embedding, pe, 8, dtype=x1.dtype)
    out1 = jax.block_until_ready(
        add_positional_encoding(x1, pe_seq1, force_pallas=True))
    np.testing.assert_allclose(np.asarray(out1),
                               np.asarray(_reference(x1, param_embedding, pe)),
                               rtol=1e-6, atol=1e-6)

    # --- case 2: multi-block S grid + 2-chunk batch replication --------------
    x2 = jax.random.normal(k2, (32, 8, d_model), dtype=jnp.float32)   # B*D = 256
    pe_seq2 = build_pe_sequence(param_embedding, pe, 32, dtype=x2.dtype)
    out2 = jax.block_until_ready(
        add_positional_encoding(x2, pe_seq2, block_s=8, force_pallas=True))
    np.testing.assert_allclose(np.asarray(out2),
                               np.asarray(_reference(x2, param_embedding, pe)),
                               rtol=1e-6, atol=1e-6)

    # --- case 3: non-divisible S -> masked tail block -------------------------
    pe3_param, pe3 = make_tqs_pe_params(k_param, d_model, param_dim, (5, 5))
    x3 = jax.random.normal(k3, (27, 8, d_model), dtype=jnp.float32)   # 2+25=27 rows
    pe_seq3 = build_pe_sequence(pe3_param, pe3, 27, dtype=x3.dtype)
    out3 = jax.block_until_ready(
        add_positional_encoding(x3, pe_seq3, block_s=8, force_pallas=True))
    np.testing.assert_allclose(np.asarray(out3),
                               np.asarray(_reference(x3, pe3_param, pe3)),
                               rtol=1e-6, atol=1e-6)

    # --- case 4: B*D % 128 != 0 -> XLA fast-path fallback ---------------------
    x4 = jax.random.normal(k4, (16, 2, d_model), dtype=jnp.float32)   # B*D = 64
    pe_seq4 = build_pe_sequence(param_embedding, pe, 16, dtype=x4.dtype)
    out4 = jax.block_until_ready(add_positional_encoding(x4, pe_seq4))
    np.testing.assert_allclose(np.asarray(out4),
                               np.asarray(_reference(x4, param_embedding, pe)),
                               rtol=1e-6, atol=1e-6)

    print("KERNEL_OK")
</pallas_src>

<mosaic_0001>
module attributes {stable_mosaic.version = 11 : i64} {
  func.func @_add_pe_kernel(%arg0: i32, %arg1: i32, %arg2: memref<8x128xf32, #tpu.memory_space<vmem>>, %arg3: memref<8x128xf32, #tpu.memory_space<vmem>>, %arg4: memref<8x128xf32, #tpu.memory_space<vmem>>) attributes {dimension_semantics = [#tpu.dimension_semantics<parallel>, #tpu.dimension_semantics<parallel>], iteration_bounds = array<i64: 1, 1>, scalar_prefetch = 0 : i64, scratch_operands = 0 : i64, tpu.core_type = #tpu.core_type<tc>, window_params = [{transform_indices = @transform_0, window_bounds = array<i64: 8, 128>}, {transform_indices = @transform_1, window_bounds = array<i64: 8, 128>}, {transform_indices = @transform_2, window_bounds = array<i64: 8, 128>}]} {
    %c0 = arith.constant 0 : index
    %c0_0 = arith.constant 0 : index
    %0 = vector.load %arg3[%c0, %c0_0] : memref<8x128xf32, #tpu.memory_space<vmem>>, vector<8x128xf32>
    %c0_1 = arith.constant 0 : index
    %c0_2 = arith.constant 0 : index
    %1 = vector.load %arg2[%c0_1, %c0_2] : memref<8x128xf32, #tpu.memory_space<vmem>>, vector<8x128xf32>
    %2 = arith.addf %1, %0 : vector<8x128xf32>
    %c0_3 = arith.constant 0 : index
    %c0_4 = arith.constant 0 : index
    %3 = vector.load %arg4[%c0_3, %c0_4] : memref<8x128xf32, #tpu.memory_space<vmem>>, vector<8x128xf32>
    tpu.vector_store %arg4[%c0_3, %c0_4], %2 {strides = array<i32>} : memref<8x128xf32, #tpu.memory_space<vmem>>, vector<8x128xf32>,
    return
  }
  func.func @transform_0(%arg0: i32, %arg1: i32) -> (i32, i32) {
    %c0_i32 = arith.constant 0 : i32
    return %arg0, %arg1 : i32, i32
  }
  func.func @transform_1(%arg0: i32, %arg1: i32) -> (i32, i32) {
    %c0_i32 = arith.constant 0 : i32
    %c0_i32_0 = arith.constant 0 : i32
    return %arg0, %c0_i32 : i32, i32
  }
  func.func @transform_2(%arg0: i32, %arg1: i32) -> (i32, i32) {
    %c0_i32 = arith.constant 0 : i32
    return %arg0, %arg1 : i32, i32
  }
}

</mosaic_0001>

<llo_original>
// kernel: tpu_custom_call.1
$region0: #{tpu_custom_call.1}
  #allocation0 [shape = 'u32[]', space=smem, size = 0x4, offset = 0x4, fixed_abs, tag = 'smem constant byte address 0x4 - core index']
  #allocation1 [shape = 'u32[144,128]{1,0:T(1,128)}', space=vmem, size = 0x12000, scoped, tag = 'internal scratch']
  %s0 = inlined_call_operand.hbm [shape: f32[8,128], index: 0, kind: input, shape index: {}]
  %s1 = inlined_call_operand.hbm [shape: f32[8,128], index: 1, kind: input, shape index: {}]
  %s2 = inlined_call_operand.hbm [shape: f32[8,128], index: 2, kind: output, shape index: {}]
  %s3 = sld [smem:[#allocation0]]
  $region26: #{tpu_custom_call.1} parent=0
    _
  %s5 = ssub.s32 1, %s3
  %s6 = scalar_select 0, %s5, %s3
  $region1: #{tpu_custom_call.1} parent=0
    #allocation2 [shape = 'u8[4096]{0}', space=vmem, size = 0x1000, scoped, tag = 'input window, operand 0, single buffered']
    #allocation3 [shape = 's32[1]{0}', space=sflag, size = 0x4, scoped, tag = 'scoped memory for tpu_custom_call.1']
    #allocation4 [shape = 's32[1]{0}', space=sflag, size = 0x4, scoped, tag = 'scoped memory for tpu_custom_call.1']
    #allocation5 [shape = 'u8[4096]{0}', space=vmem, size = 0x1000, scoped, tag = 'input window, operand 1, single buffered']
    #allocation6 [shape = 's32[1]{0}', space=sflag, size = 0x4, scoped, tag = 'scoped memory for tpu_custom_call.1']
    #allocation7 [shape = 'u8[4096]{0}', space=vmem, size = 0x1000, scoped, tag = 'output window, operand 0, single buffered']
    %7 = vsyncpa [#allocation3], 0
    %8 = vsyncpa [#allocation6], 0
    %9 = vsyncpa [#allocation4], 0
    // Predicated region
    $region2: #{tpu_custom_call.1} parent=1 // pred_check
      _
    $region3: #{tpu_custom_call.1} parent=1 // pred_check_branch
      %11 = sbr.rel (0) target = $region5
    $region4: #{tpu_custom_call.1} parent=1 // pred_region
      %s13 = ssub.s32 128, 128
      %14 = vsyncadd [#allocation3], %s13
      %s16 = sshll.u32 [#allocation2], 4
      %s17 = int_to_ptr.vmem [resolvable:$true] %s16
      %19 = dma.hbm_to_vmem [thread:$0]  %s0, 128, %s17, [#allocation3]
    $region5: #{tpu_custom_call.1} parent=1 // pred_fallthru
      _
    // Predicated region
    $region6: #{tpu_custom_call.1} parent=1 // pred_check
      _
    $region7: #{tpu_custom_call.1} parent=1 // pred_check_branch
      %21 = sbr.rel (0) target = $region9
    $region8: #{tpu_custom_call.1} parent=1 // pred_region
      %s23 = ssub.s32 128, 128
      %24 = vsyncadd [#allocation6], %s23
      %s26 = sshll.u32 [#allocation5], 4
      %s27 = int_to_ptr.vmem [resolvable:$true] %s26
      %29 = dma.hbm_to_vmem [thread:$0]  %s1, 128, %s27, [#allocation6]
    $region9: #{tpu_custom_call.1} parent=1 // pred_fallthru
      _
    // Predicated region
    $region10: #{tpu_custom_call.1} parent=1 // pred_check
      _
    $region11: #{tpu_custom_call.1} parent=1 // pred_check_branch
      %31 = sbr.rel (0) target = $region13
    $region12: #{tpu_custom_call.1} parent=1 // pred_region
      %32 = dma.done [#allocation3], 128
    $region13: #{tpu_custom_call.1} parent=1 // pred_fallthru
      _
    // Predicated region
    $region14: #{tpu_custom_call.1} parent=1 // pred_check
      _
    $region15: #{tpu_custom_call.1} parent=1 // pred_check_branch
      %34 = sbr.rel (0) target = $region17
    $region16: #{tpu_custom_call.1} parent=1 // pred_region
      %35 = dma.done [#allocation6], 128
    $region17: #{tpu_custom_call.1} parent=1 // pred_fallthru
      _
    %v36 = vld [vmem:[#allocation5] sm:$0xff]
    %v37 = vld [vmem:[#allocation2] sm:$0xff]
    %v38 = vadd.f32 %v37, %v36
    %39 = vst [vmem:[#allocation7] sm:$0xff] %v38
    // Predicated region
    $region18: #{tpu_custom_call.1} parent=1 // pred_check
      _
    $region19: #{tpu_custom_call.1} parent=1 // pred_check_branch
      %41 = sbr.rel (0) target = $region21
    $region20: #{tpu_custom_call.1} parent=1 // pred_region
      %s43 = ssub.s32 128, 128
      %44 = vsyncadd [#allocation4], %s43
      %s46 = sshll.u32 [#allocation7], 4
      %s47 = int_to_ptr.vmem [resolvable:$true] %s46
      %49 = dma.vmem_to_hbm [thread:$0]  %s47, 128, %s2, [#allocation4]
    $region21: #{tpu_custom_call.1} parent=1 // pred_fallthru
      _
    // Predicated region
    $region22: #{tpu_custom_call.1} parent=1 // pred_check
      _
    $region23: #{tpu_custom_call.1} parent=1 // pred_check_branch
      %51 = sbr.rel (0) target = $region25
    $region24: #{tpu_custom_call.1} parent=1 // pred_region
      %52 = dma.done [#allocation4], 128
    $region25: #{tpu_custom_call.1} parent=1 // pred_fallthru
      _
    %53 = vsyncpa [#allocation3], 1
    %54 = vsyncpa [#allocation6], 1
    %55 = vsyncpa [#allocation4], 1

</llo_original>
